<compile_context>
chip_gen: v7x
topology: tpu7x:2x2x1
jax: 0.10.0
libtpu: 0.0.40
codegen_flags: <defaults>
</compile_context>

<pallas_src>
import jax
import jax.numpy as jnp
from jax.experimental import pallas as pl
from jax.experimental.pallas import tpu as pltpu


_PACK_W = 128            # lane-dense packed output width (multiple of 128)
_MiB = 1024 * 1024


def _round_up(x, m):
    return (x + m - 1) // m * m


def _tpu_vmem_bytes():
    try:
        return int(pltpu.get_tpu_info().vmem_capacity_bytes)
    except Exception:               # interpret mode / older jax: assume v5e/v6e-class VMEM
        return 128 * _MiB


def _select_tiling(B, D):
    """Per-generation batch-tile size, padded batch, and scoped-VMEM budget."""
    vmem = _tpu_vmem_bytes()
    if vmem <= 64 * _MiB:           # v7x-class TensorCore: small VMEM, 2 cores/chip
        tb_cap = 256 if D >= 3072 else 512
        vmem_limit = 48 * _MiB      # leave headroom for Mosaic internal scratch / spills
    else:                           # v5e / v6e: 128 MiB VMEM -> bigger tiles, fewer steps
        tb_cap = 1024
        vmem_limit = 96 * _MiB
    b16 = _round_up(max(B, 1), 16)              # 16 = bf16 sublane tile height
    min_steps = 2 if b16 >= 32 else 1           # >=2 steps -> both v7x TCs + DMA/compute overlap
    steps = max(min_steps, pl.cdiv(b16, tb_cap))
    tb = _round_up(pl.cdiv(b16, steps), 16)
    return tb, steps * tb, vmem_limit


def _invariant_spec(block_shape, single_buffer):
    """Grid-invariant operand (weights/biases): the block index never changes, so a single
    VMEM buffer suffices; Buffered(1) halves its resident footprint (applied only when the
    operand is big enough for it to matter)."""
    if single_buffer and hasattr(pl, "Buffered"):
        try:
            return pl.BlockSpec(block_shape, lambda i: (0, 0), pipeline_mode=pl.Buffered(1))
        except TypeError:           # older jax without pipeline_mode kwarg
            pass
    return pl.BlockSpec(block_shape, lambda i: (0, 0))


def _make_kernel(num_classes: int, tile_b: int):
    C = num_classes
    pad_w = _PACK_W - (3 * C + 1)

    def kernel(x_ref, w13_ref, b13_ref, w24_ref, b24_ref, out_ref):
        # ---- fused first layer: cast x to bf16 in-kernel (VPU, noise) -> one MXU pass D -> 3D/4
        xb = x_ref[...].astype(jnp.bfloat16)
        h = jnp.dot(xb, w13_ref[...], preferred_element_type=jnp.float32)
        # ReLU + bf16 down-cast fused: only the bf16 hidden tensor is written to VMEM.
        # Dropout(0.3) is identity in eval mode.
        h = jnp.maximum(h + b13_ref[...], 0.0).astype(jnp.bfloat16)
        # TODO(synk): add stochastic dropout (pltpu.prng_*) if training-mode semantics are needed.

        # ---- fused second layer: relu_h @ blockdiag(w2, w4) -> [TB, 2C]
        logits = jnp.dot(h, w24_ref[...], preferred_element_type=jnp.float32) + b24_ref[...]
        sp = jnp.logaddexp(logits, 0.0)                  # softplus: [evidence | aleatoric]
        evidence = sp[:, :C]
        aleatoric = sp[:, C:]

        # ---- evidential combine
        alpha = evidence + 1.0
        S = jnp.sum(alpha, axis=1, keepdims=True)        # [TB,1], S >= C > 0
        inv_S = 1.0 / S                                  # exact: probs sum to 1 (PyTorch parity)
        probs = alpha * inv_S
        epistemic = jnp.float32(C) * inv_S               # [TB,1]

        # ---- single lane-dense unmasked store: [probs | epi | aleatoric | alpha | 0-pad]
        pad = jnp.zeros((tile_b, pad_w), jnp.float32)
        out_ref[...] = jnp.concatenate([probs, epistemic, aleatoric, alpha, pad], axis=1)

    return kernel


def prepare_params(params):
    """Fuse the four Linear layers into two MXU operands.  Call ONCE at model-load time
    (hoisted out of the per-call path per the performance review)."""
    w1, w3 = params["w1"], params["w3"]
    H1 = w1.shape[1]
    H2 = w3.shape[1]
    C = params["w2"].shape[1]
    H = H1 + H2
    w13 = jnp.concatenate([w1, w3], axis=1).astype(jnp.bfloat16)                      # [D, H]
    b13 = jnp.concatenate([params["b1"], params["b3"]], axis=1).astype(jnp.float32)   # [1, H]
    w24 = jnp.zeros((H, 2 * C), jnp.float32)
    w24 = w24.at[:H1, :C].set(params["w2"])      # evidence head
    w24 = w24.at[H1:, C:].set(params["w4"])      # aleatoric head
    w24 = w24.astype(jnp.bfloat16)                                                    # [H, 2C]
    b24 = jnp.concatenate([params["b2"], params["b4"]], axis=1).astype(jnp.float32)   # [1, 2C]
    # TODO(synk): on v7x, optionally quantize w13/w24 to fp8 (halves resident weight VMEM).
    return {"w13": w13, "b13": b13, "w24": w24, "b24": b24, "num_classes": C}


def uncertainty_module(x, fused):
    """x: [B, D] float32 (kept f32 in HBM; cast to bf16 inside the kernel).
    fused: output of prepare_params().
    Returns (probs [B,C], epistemic [B,1], aleatoric [B,C], alpha [B,C]) in float32."""
    B, D = x.shape
    C = int(fused["num_classes"])
    H = fused["w13"].shape[1]
    assert 3 * C + 1 <= _PACK_W, "num_classes too large for the packed output slab"

    TB, B_pad, vmem_limit = _select_tiling(B, D)
    if B_pad != B:
        # zero-pad: zero rows stay finite through relu/softplus and are sliced off below.
        x = jnp.pad(x, ((0, B_pad - B), (0, 0)))

    single_buf = fused["w13"].size * 2 > 4 * _MiB   # bf16 bytes; only bother for big weights

    packed = pl.pallas_call(
        _make_kernel(C, TB),
        out_shape=jax.ShapeDtypeStruct((B_pad, _PACK_W), jnp.float32),
        grid=(B_pad // TB,),
        in_specs=[
            pl.BlockSpec((TB, D), lambda i: (i, 0)),        # x: streamed per batch tile (f32)
            _invariant_spec((D, H), single_buf),            # fused layer-1 weights (VMEM-resident)
            _invariant_spec((1, H), False),
            _invariant_spec((H, 2 * C), single_buf),        # block-diag layer-2 weights
            _invariant_spec((1, 2 * C), False),
        ],
        out_specs=pl.BlockSpec((TB, _PACK_W), lambda i: (i, 0)),
        compiler_params=pltpu.CompilerParams(
            dimension_semantics=("parallel",),              # batch tiles across v7x's two TCs
            vmem_limit_bytes=vmem_limit,
        ),
        # TODO(synk): K-tile the first matmul with a VMEM accumulator if D grows past ~4k so
        # resident bf16 weights + double-buffered x tiles stay under v7x's 64 MiB VMEM.
    )(x, fused["w13"], fused["b13"], fused["w24"], fused["b24"])

    packed = packed[:B]
    probs = packed[:, :C]
    epistemic = packed[:, C:C + 1]
    aleatoric = packed[:, C + 1:2 * C + 1]
    alpha = packed[:, 2 * C + 1:3 * C + 1]
    # NOTE: for mem-bound tiny-D deployments the packed slab could be bf16 (halves writeback)
    # if ~3-significant-digit probs/epistemic are acceptable.
    return probs, epistemic, aleatoric, alpha


def init_params(key, input_dim, num_classes=3):
    """PyTorch-Linear-like init; weights stored pre-transposed as [in,out], biases [1,out]."""
    d, h1, h2, c = input_dim, input_dim // 2, input_dim // 4, num_classes
    ks = jax.random.split(key, 8)

    def lin(kw, kb, fan_in, fan_out):
        bound = 1.0 / jnp.sqrt(jnp.float32(fan_in))
        w = jax.random.uniform(kw, (fan_in, fan_out), jnp.float32, -bound, bound)
        b = jax.random.uniform(kb, (1, fan_out), jnp.float32, -bound, bound)
        return w, b

    w1, b1 = lin(ks[0], ks[1], d, h1)
    w2, b2 = lin(ks[2], ks[3], h1, c)
    w3, b3 = lin(ks[4], ks[5], d, h2)
    w4, b4 = lin(ks[6], ks[7], h2, c)
    return {"w1": w1, "b1": b1, "w2": w2, "b2": b2,
            "w3": w3, "b3": b3, "w4": w4, "b4": b4}


def _softplus(z):
    return jnp.logaddexp(z, 0.0)


def reference_f32(x, p, num_classes=3):
    """Pure-f32 reference matching the PyTorch module exactly."""
    h1 = jnp.maximum(x @ p["w1"] + p["b1"], 0.0)
    evidence = _softplus(h1 @ p["w2"] + p["b2"])
    h2 = jnp.maximum(x @ p["w3"] + p["b3"], 0.0)
    aleatoric = _softplus(h2 @ p["w4"] + p["b4"])
    alpha = evidence + 1.0
    S = jnp.sum(alpha, axis=1, keepdims=True)
    return alpha / S, num_classes / S, aleatoric, alpha


def reference_bf16(x, p, num_classes=3):
    """Mirrors the kernel's bf16 MXU operands / f32 accumulation for a tight check."""
    q = lambda a: a.astype(jnp.bfloat16).astype(jnp.float32)
    h1 = jnp.maximum(q(x) @ q(p["w1"]) + p["b1"], 0.0)
    evidence = _softplus(q(h1) @ q(p["w2"]) + p["b2"])
    h2 = jnp.maximum(q(x) @ q(p["w3"]) + p["b3"], 0.0)
    aleatoric = _softplus(q(h2) @ q(p["w4"]) + p["b4"])
    alpha = evidence + 1.0
    S = jnp.sum(alpha, axis=1, keepdims=True)
    return alpha / S, num_classes / S, aleatoric, alpha


if __name__ == "__main__":
    B, D, C = 8, 32, 3
    key = jax.random.PRNGKey(0)
    kx, kp = jax.random.split(key)
    x = jax.random.normal(kx, (B, D), jnp.float32)
    params = init_params(kp, D, C)

    fused = prepare_params(params)          # one-time weight fusion (hoisted out of per-call path)
    outs = jax.block_until_ready(uncertainty_module(x, fused))

    tight = reference_bf16(x, params, num_classes=C)
    loose = reference_f32(x, params, num_classes=C)
    for name, o, rt, rl in zip(("probs", "epistemic", "aleatoric", "alpha"), outs, tight, loose):
        assert o.shape == rt.shape, (name, o.shape, rt.shape)
        assert bool(jnp.allclose(o, rt, atol=1e-2, rtol=1e-2)), name   # kernel vs bf16-op reference
        assert bool(jnp.allclose(o, rl, atol=5e-2, rtol=5e-2)), name   # kernel vs exact f32 module

    print("KERNEL_OK")
</pallas_src>

<mosaic_0001>
module attributes {stable_mosaic.version = 11 : i64} {
  func.func @kernel(%arg0: i32, %arg1: memref<16x32xf32, #tpu.memory_space<vmem>>, %arg2: memref<32x24xbf16, #tpu.memory_space<vmem>>, %arg3: memref<1x24xf32, #tpu.memory_space<vmem>>, %arg4: memref<24x6xbf16, #tpu.memory_space<vmem>>, %arg5: memref<1x6xf32, #tpu.memory_space<vmem>>, %arg6: memref<16x128xf32, #tpu.memory_space<vmem>>) attributes {dimension_semantics = [#tpu.dimension_semantics<parallel>], iteration_bounds = array<i64: 1>, scalar_prefetch = 0 : i64, scratch_operands = 0 : i64, tpu.core_type = #tpu.core_type<tc>, window_params = [{transform_indices = @transform_0, window_bounds = array<i64: 16, 32>}, {pipeline_mode = #tpu.pipeline_mode<synchronous>, transform_indices = @transform_1, window_bounds = array<i64: 32, 24>}, {pipeline_mode = #tpu.pipeline_mode<synchronous>, transform_indices = @transform_2, window_bounds = array<i64: 1, 24>}, {pipeline_mode = #tpu.pipeline_mode<synchronous>, transform_indices = @transform_3, window_bounds = array<i64: 24, 6>}, {pipeline_mode = #tpu.pipeline_mode<synchronous>, transform_indices = @transform_4, window_bounds = array<i64: 1, 6>}, {transform_indices = @transform_5, window_bounds = array<i64: 16, 128>}]} {
    %c0 = arith.constant 0 : index
    %c0_0 = arith.constant 0 : index
    %0 = vector.load %arg1[%c0, %c0_0] : memref<16x32xf32, #tpu.memory_space<vmem>>, vector<16x32xf32>
    %1 = arith.truncf %0 : vector<16x32xf32> to vector<16x32xbf16>
    %c0_1 = arith.constant 0 : index
    %c0_2 = arith.constant 0 : index
    %2 = vector.load %arg2[%c0_1, %c0_2] : memref<32x24xbf16, #tpu.memory_space<vmem>>, vector<32x24xbf16>
    %cst = arith.constant dense<0.000000e+00> : vector<16x24xf32>
    %3 = tpu.matmul %1, %2, %cst {dimension_numbers = #tpu.dot_dimension_numbers<[1], [0], [0], [1], [0, 0, 1, 1], [], []>} : vector<16x32xbf16>, vector<32x24xbf16>, vector<16x24xf32> -> vector<16x24xf32>
    %c0_3 = arith.constant 0 : index
    %c0_4 = arith.constant 0 : index
    %4 = vector.load %arg3[%c0_3, %c0_4] : memref<1x24xf32, #tpu.memory_space<vmem>>, vector<1x24xf32>
    %5 = vector.broadcast %4 : vector<1x24xf32> to vector<16x24xf32>
    %6 = arith.addf %3, %5 : vector<16x24xf32>
    %cst_5 = arith.constant 0.000000e+00 : f32
    %7 = vector.broadcast %cst_5 : f32 to vector<16x24xf32>
    %8 = arith.maximumf %6, %7 : vector<16x24xf32>
    %9 = arith.truncf %8 : vector<16x24xf32> to vector<16x24xbf16>
    %c0_6 = arith.constant 0 : index
    %c0_7 = arith.constant 0 : index
    %10 = vector.load %arg4[%c0_6, %c0_7] : memref<24x6xbf16, #tpu.memory_space<vmem>>, vector<24x6xbf16>
    %cst_8 = arith.constant dense<0.000000e+00> : vector<16x6xf32>
    %11 = tpu.matmul %9, %10, %cst_8 {dimension_numbers = #tpu.dot_dimension_numbers<[1], [0], [0], [1], [0, 0, 1, 1], [], []>} : vector<16x24xbf16>, vector<24x6xbf16>, vector<16x6xf32> -> vector<16x6xf32>
    %c0_9 = arith.constant 0 : index
    %c0_10 = arith.constant 0 : index
    %12 = vector.load %arg5[%c0_9, %c0_10] : memref<1x6xf32, #tpu.memory_space<vmem>>, vector<1x6xf32>
    %13 = vector.broadcast %12 : vector<1x6xf32> to vector<16x6xf32>
    %14 = arith.addf %11, %13 : vector<16x6xf32>
    %cst_11 = arith.constant 0.000000e+00 : f32
    %15 = vector.broadcast %cst_11 : f32 to vector<16x6xf32>
    %16 = arith.maximumf %14, %15 : vector<16x6xf32>
    %17 = vector.broadcast %cst_11 : f32 to vector<16x6xf32>
    %18 = arith.subf %14, %17 : vector<16x6xf32>
    %19 = arith.cmpf one, %18, %18 : vector<16x6xf32>
    %20 = vector.broadcast %cst_11 : f32 to vector<16x6xf32>
    %21 = arith.addf %14, %20 : vector<16x6xf32>
    %22 = math.absf %18 : vector<16x6xf32>
    %cst_12 = arith.constant 0.000000e+00 : f32
    %23 = vector.broadcast %cst_12 : f32 to vector<16x6xf32>
    %24 = arith.subf %23, %22 : vector<16x6xf32>
    %25 = math.exp %24 : vector<16x6xf32>
    %26 = math.log1p %25 : vector<16x6xf32>
    %27 = arith.addf %16, %26 : vector<16x6xf32>
    %28 = arith.select %19, %21, %27 : vector<16x6xi1>, vector<16x6xf32>
    %29 = vector.extract_strided_slice %28 {offsets = [0, 0], sizes = [16, 3], strides = [1, 1]} : vector<16x6xf32> to vector<16x3xf32>
    %30 = vector.extract_strided_slice %28 {offsets = [0, 3], sizes = [16, 3], strides = [1, 1]} : vector<16x6xf32> to vector<16x3xf32>
    %cst_13 = arith.constant 1.000000e+00 : f32
    %31 = vector.broadcast %cst_13 : f32 to vector<16x3xf32>
    %32 = arith.addf %29, %31 : vector<16x3xf32>
    %cst_14 = arith.constant dense<0.000000e+00> : vector<16xf32>
    %33 = vector.multi_reduction <add>, %32, %cst_14 [1] : vector<16x3xf32> to vector<16xf32>
    %34 = vector.shape_cast %33 : vector<16xf32> to vector<16x1xf32>
    %cst_15 = arith.constant 1.000000e+00 : f32
    %35 = vector.broadcast %cst_15 : f32 to vector<16x1xf32>
    %36 = arith.divf %35, %34 : vector<16x1xf32>
    %37 = vector.broadcast %36 : vector<16x1xf32> to vector<16x3xf32>
    %38 = arith.mulf %32, %37 : vector<16x3xf32>
    %cst_16 = arith.constant 3.000000e+00 : f32
    %39 = vector.broadcast %cst_16 : f32 to vector<16x1xf32>
    %40 = arith.mulf %39, %36 : vector<16x1xf32>
    %cst_17 = arith.constant 0.000000e+00 : f32
    %41 = vector.broadcast %cst_17 : f32 to vector<16x118xf32>
    %42 = tpu.concatenate %38, %40, %30, %32, %41 in 1 : vector<16x3xf32>, vector<16x1xf32>, vector<16x3xf32>, vector<16x3xf32>, vector<16x118xf32> -> vector<16x128xf32>
    %c0_18 = arith.constant 0 : index
    %c0_19 = arith.constant 0 : index
    %43 = vector.load %arg6[%c0_18, %c0_19] : memref<16x128xf32, #tpu.memory_space<vmem>>, vector<16x128xf32>
    tpu.vector_store %arg6[%c0_18, %c0_19], %42 {strides = array<i32>} : memref<16x128xf32, #tpu.memory_space<vmem>>, vector<16x128xf32>,
    return
  }
  func.func @transform_0(%arg0: i32) -> (i32, i32) {
    %c0_i32 = arith.constant 0 : i32
    %c0_i32_0 = arith.constant 0 : i32
    return %arg0, %c0_i32 : i32, i32
  }
  func.func @transform_1(%arg0: i32) -> (i32, i32) {
    %c0_i32 = arith.constant 0 : i32
    %c0_i32_0 = arith.constant 0 : i32
    %c0_i32_1 = arith.constant 0 : i32
    return %c0_i32, %c0_i32_0 : i32, i32
  }
  func.func @transform_2(%arg0: i32) -> (i32, i32) {
    %c0_i32 = arith.constant 0 : i32
    %c0_i32_0 = arith.constant 0 : i32
    %c0_i32_1 = arith.constant 0 : i32
    return %c0_i32, %c0_i32_0 : i32, i32
  }
  func.func @transform_3(%arg0: i32) -> (i32, i32) {
    %c0_i32 = arith.constant 0 : i32
    %c0_i32_0 = arith.constant 0 : i32
    %c0_i32_1 = arith.constant 0 : i32
    return %c0_i32, %c0_i32_0 : i32, i32
  }
  func.func @transform_4(%arg0: i32) -> (i32, i32) {
    %c0_i32 = arith.constant 0 : i32
    %c0_i32_0 = arith.constant 0 : i32
    %c0_i32_1 = arith.constant 0 : i32
    return %c0_i32, %c0_i32_0 : i32, i32
  }
  func.func @transform_5(%arg0: i32) -> (i32, i32) {
    %c0_i32 = arith.constant 0 : i32
    %c0_i32_0 = arith.constant 0 : i32
    return %arg0, %c0_i32 : i32, i32
  }
}

</mosaic_0001>

<llo_original>
// kernel: tpu_custom_call.1
$region0: #{tpu_custom_call.1}
  #allocation0 [shape = 'u32[]', space=smem, size = 0x4, offset = 0x4, fixed_abs, tag = 'smem constant byte address 0x4 - core index']
  #allocation1 [shape = 'u32[144,128]{1,0:T(1,128)}', space=vmem, size = 0x12000, scoped, tag = 'internal scratch']
  %s0 = inlined_call_operand.hbm [shape: f32[16,32], index: 0, kind: input, shape index: {}]
  %s1 = inlined_call_operand.hbm [shape: bf16[32,24], index: 1, kind: input, shape index: {}]
  %s2 = inlined_call_operand.hbm [shape: f32[1,24], index: 2, kind: input, shape index: {}]
  %s3 = inlined_call_operand.hbm [shape: bf16[24,6], index: 3, kind: input, shape index: {}]
  %s4 = inlined_call_operand.hbm [shape: f32[1,6], index: 4, kind: input, shape index: {}]
  %s5 = inlined_call_operand.hbm [shape: f32[16,128], index: 5, kind: output, shape index: {}]
  %s6 = sld [smem:[#allocation0]]
  $region50: #{tpu_custom_call.1} parent=0
    _
  %s8 = ssub.s32 1, %s6
  %s9 = scalar_select 0, %s8, %s6
  $region1: #{tpu_custom_call.1} parent=0
    #allocation2 [shape = 'u8[8192]{0}', space=vmem, size = 0x2000, scoped, tag = 'input window, operand 0, single buffered']
    #allocation3 [shape = 's32[1]{0}', space=sflag, size = 0x4, scoped, tag = 'scoped memory for tpu_custom_call.1']
    #allocation4 [shape = 's32[1]{0}', space=sflag, size = 0x4, scoped, tag = 'scoped memory for tpu_custom_call.1']
    #allocation5 [shape = 'u8[8192]{0}', space=vmem, size = 0x2000, scoped, tag = 'input window, operand 1, single buffered']
    #allocation6 [shape = 's32[1]{0}', space=sflag, size = 0x4, scoped, tag = 'scoped memory for tpu_custom_call.1']
    #allocation7 [shape = 'u8[512]{0}', space=vmem, size = 0x400, scoped, tag = 'input window, operand 2, single buffered']
    #allocation8 [shape = 'u8[6144]{0}', space=vmem, size = 0x1800, scoped, tag = 'input window, operand 3, single buffered']
    #allocation9 [shape = 's32[1]{0}', space=sflag, size = 0x4, scoped, tag = 'scoped memory for tpu_custom_call.1']
    #allocation10 [shape = 'u8[512]{0}', space=vmem, size = 0x400, scoped, tag = 'input window, operand 4, single buffered']
    #allocation11 [shape = 'u8[8192]{0}', space=vmem, size = 0x2000, scoped, tag = 'output window, operand 0, single buffered']
    %10 = vsyncpa [#allocation3], 0
    %11 = vsyncpa [#allocation6], 0
    %12 = vsyncpa [#allocation9], 0
    %13 = vsyncpa [#allocation4], 0
    // Predicated region
    $region2: #{tpu_custom_call.1} parent=1 // pred_check
      _
    $region3: #{tpu_custom_call.1} parent=1 // pred_check_branch
      %15 = sbr.rel (0) target = $region5
    $region4: #{tpu_custom_call.1} parent=1 // pred_region
      %s17 = ssub.s32 256, 256
      %18 = vsyncadd [#allocation3], %s17
      %s19 = sshll.u32 [#allocation2], 4
      %s20 = int_to_ptr.vmem [resolvable:$true] %s19
      %25 = dma.hbm_to_vmem [thread:$0]  %s0, 256, %s20, [#allocation3], 128, 128, 8
    $region5: #{tpu_custom_call.1} parent=1 // pred_fallthru
      _
    // Predicated region
    $region6: #{tpu_custom_call.1} parent=1 // pred_check
      _
    $region7: #{tpu_custom_call.1} parent=1 // pred_check_branch
      %27 = sbr.rel (0) target = $region9
    $region8: #{tpu_custom_call.1} parent=1 // pred_region
      %s29 = ssub.s32 256, 256
      %30 = vsyncadd [#allocation6], %s29
      %s31 = sshll.u32 [#allocation5], 4
      %s32 = int_to_ptr.vmem [resolvable:$true] %s31
      %37 = dma.hbm_to_vmem [thread:$0]  %s1, 256, %s32, [#allocation6], 64, 64, 4
    $region9: #{tpu_custom_call.1} parent=1 // pred_fallthru
      _
    // Predicated region
    $region10: #{tpu_custom_call.1} parent=1 // pred_check
      _
    $region11: #{tpu_custom_call.1} parent=1 // pred_check_branch
      %39 = sbr.rel (0) target = $region13
    $region12: #{tpu_custom_call.1} parent=1 // pred_region
      %s41 = ssub.s32 16, 16
      %42 = vsyncadd [#allocation6], %s41
      %s44 = sshll.u32 [#allocation7], 4
      %s45 = int_to_ptr.vmem [resolvable:$true] %s44
      %47 = dma.hbm_to_vmem [thread:$0]  %s2, 16, %s45, [#allocation6]
    $region13: #{tpu_custom_call.1} parent=1 // pred_fallthru
      _
    // Predicated region
    $region14: #{tpu_custom_call.1} parent=1 // pred_check
      _
    $region15: #{tpu_custom_call.1} parent=1 // pred_check_branch
      %49 = sbr.rel (0) target = $region17
    $region16: #{tpu_custom_call.1} parent=1 // pred_region
      %s51 = ssub.s32 192, 192
      %52 = vsyncadd [#allocation9], %s51
      %s53 = sshll.u32 [#allocation8], 4
      %s54 = int_to_ptr.vmem [resolvable:$true] %s53
      %59 = dma.hbm_to_vmem [thread:$0]  %s3, 192, %s54, [#allocation9], 64, 64, 4
    $region17: #{tpu_custom_call.1} parent=1 // pred_fallthru
      _
    // Predicated region
    $region18: #{tpu_custom_call.1} parent=1 // pred_check
      _
    $region19: #{tpu_custom_call.1} parent=1 // pred_check_branch
      %61 = sbr.rel (0) target = $region21
    $region20: #{tpu_custom_call.1} parent=1 // pred_region
      %s63 = ssub.s32 16, 16
      %64 = vsyncadd [#allocation9], %s63
      %s66 = sshll.u32 [#allocation10], 4
      %s67 = int_to_ptr.vmem [resolvable:$true] %s66
      %69 = dma.hbm_to_vmem [thread:$0]  %s4, 16, %s67, [#allocation9]
    $region21: #{tpu_custom_call.1} parent=1 // pred_fallthru
      _
    // Predicated region
    $region22: #{tpu_custom_call.1} parent=1 // pred_check
      _
    $region23: #{tpu_custom_call.1} parent=1 // pred_check_branch
      %71 = sbr.rel (0) target = $region25
    $region24: #{tpu_custom_call.1} parent=1 // pred_region
      %72 = dma.done [#allocation3], 256
    $region25: #{tpu_custom_call.1} parent=1 // pred_fallthru
      _
    // Predicated region
    $region26: #{tpu_custom_call.1} parent=1 // pred_check
      _
    $region27: #{tpu_custom_call.1} parent=1 // pred_check_branch
      %74 = sbr.rel (0) target = $region29
    $region28: #{tpu_custom_call.1} parent=1 // pred_region
      %75 = dma.done [#allocation6], 256
    $region29: #{tpu_custom_call.1} parent=1 // pred_fallthru
      _
    // Predicated region
    $region30: #{tpu_custom_call.1} parent=1 // pred_check
      _
    $region31: #{tpu_custom_call.1} parent=1 // pred_check_branch
      %77 = sbr.rel (0) target = $region33
    $region32: #{tpu_custom_call.1} parent=1 // pred_region
      %78 = dma.done [#allocation6], 16
    $region33: #{tpu_custom_call.1} parent=1 // pred_fallthru
      _
    // Predicated region
    $region34: #{tpu_custom_call.1} parent=1 // pred_check
      _
    $region35: #{tpu_custom_call.1} parent=1 // pred_check_branch
      %80 = sbr.rel (0) target = $region37
    $region36: #{tpu_custom_call.1} parent=1 // pred_region
      %81 = dma.done [#allocation9], 192
    $region37: #{tpu_custom_call.1} parent=1 // pred_fallthru
      _
    // Predicated region
    $region38: #{tpu_custom_call.1} parent=1 // pred_check
      _
    $region39: #{tpu_custom_call.1} parent=1 // pred_check_branch
      %83 = sbr.rel (0) target = $region41
    $region40: #{tpu_custom_call.1} parent=1 // pred_region
      %84 = dma.done [#allocation9], 16
    $region41: #{tpu_custom_call.1} parent=1 // pred_fallthru
      _
    %v86 = vld [vmem:[#allocation2] sm:$0xff]
    %v87 = vld [vmem:[#allocation2 + $0x8] sm:$0xff]
    %v88 = vpack.c.bf16 %v87, %v86
    %v89 = vld [vmem:[#allocation5] sm:$0xf]
    %v90 = vld [vmem:[#allocation5 + $0x4] sm:$0xf]
    %v91 = vld [vmem:[#allocation5 + $0x8] sm:$0xf]
    %v92 = vld [vmem:[#allocation5 + $0xc] sm:$0xf]
    %v93 = vld [vmem:[#allocation7] sm:$0x1]
    %v95 = vlaneseq
    %v96 = vshrl.u32 %v95, 7
    %v97 = vsub.s32 0, %v96
    %v98 = vrot.slane %v93, %v97
    %v104 = vunpack.c.l.b16 %v89
    %v105 = vunpack.c.l.b16 %v90
    %v106 = vunpack.c.l.b16 %v91
    %v107 = vunpack.c.l.b16 %v92
    %v108 = vpack.c.b16 %v105, %v104
    %v109 = vpack.c.b16 %v107, %v106
    %vm112 = vcmask 261120
    %v114 = vsel %vm112, %v88, 0
    %116 = vmatprep.subr.bf16.mxu0 0
    %117 = vmatpush1.bf16.msra.mxu0 %v108
    %118 = vmatprep.subr.bf16.mxu0 0
    %119 = vmatpush1.bf16.msra.mxu0 %v109
    %120 = vmatprep.subr.bf16.mxu0 0
    %121 = vmatpush1.bf16.msra.mxu0 0
    %122 = vmatprep.subr.bf16.mxu0 0
    %123 = vmatpush1.bf16.msra.mxu0 0
    %124 = vmatprep.subr.bf16.mxu0 0
    %125 = vmatpush1.bf16.msra.mxu0 0
    %126 = vmatprep.subr.bf16.mxu0 0
    %127 = vmatpush1.bf16.msra.mxu0 0
    %128 = vmatprep.subr.bf16.mxu0 0
    %129 = vmatpush1.bf16.msra.mxu0 0
    %130 = vmatprep.subr.bf16.mxu0 0
    %131 = vmatpush1.bf16.msra.mxu0 0
    %132 = vmatprep.subr.bf16.mxu0 0
    %133 = vmatpush1.bf16.msra.mxu0 0
    %134 = vmatprep.subr.bf16.mxu0 0
    %135 = vmatpush1.bf16.msra.mxu0 0
    %136 = vmatprep.subr.bf16.mxu0 0
    %137 = vmatpush1.bf16.msra.mxu0 0
    %138 = vmatprep.subr.bf16.mxu0 0
    %139 = vmatpush1.bf16.msra.mxu0 0
    %140 = vmatprep.subr.bf16.mxu0 0
    %141 = vmatpush1.bf16.msra.mxu0 0
    %142 = vmatprep.subr.bf16.mxu0 0
    %143 = vmatpush1.bf16.msra.mxu0 0
    %144 = vmatprep.subr.bf16.mxu0 0
    %145 = vmatpush1.bf16.msra.mxu0 0
    %146 = vmatprep.subr.bf16.mxu0 0
    %147 = vmatpush1.bf16.msra.mxu0 0
    %148 = vmatprep.mubr.bf16.mxu0 0
    %149 = vmatmul.mubr.bf16.gmra.mrb[0].mxu0 %v114
    %v150 = vpop.f32.mrb[0].mxu0
    %v151 = vadd.f32 %v98, %v150
    %v152 = vpop.f32.mrb[0].mxu0
    %v153 = vpop.f32.mrb[0].mxu0
    %v154 = vadd.f32 %v98, %v153
    %v155 = vpop.f32.mrb[0].mxu0
    %156 = vdwg.mxu0
    %v157 = vmax.f32 %v151, 0.0
    %v158 = vmax.f32 %v154, 0.0
    %v159 = vpack.c.bf16 %v158, %v157
    %v160 = vld [vmem:[#allocation8] sm:$0xf]
    %v161 = vld [vmem:[#allocation8 + $0x4] sm:$0xf]
    %v162 = vld [vmem:[#allocation8 + $0x8] sm:$0xf]
    %v163 = vld [vmem:[#allocation10] sm:$0x1]
    %v165 = vlaneseq
    %v166 = vshrl.u32 %v165, 7
    %v167 = vsub.s32 0, %v166
    %v168 = vrot.slane %v163, %v167
    %v173 = vunpack.c.l.b16 %v160
    %v174 = vunpack.c.l.b16 %v161
    %v175 = vunpack.c.l.b16 %v162
    %v176 = vpack.c.b16 %v174, %v173
    %v177 = vpack.c.b16 %v175, %v175
    %vm179 = vcmask 195584
    %v181 = vsel %vm179, %v159, 0
    %vm183 = vcmask 1043456
    %v185 = vsel %vm183, %v177, 0
    %187 = vmatprep.subr.bf16.mxu0 0
    %188 = vmatpush1.bf16.msra.mxu0 %v176
    %189 = vmatprep.subr.bf16.mxu0 0
    %190 = vmatpush1.bf16.msra.mxu0 %v185
    %191 = vmatprep.subr.bf16.mxu0 0
    %192 = vmatpush1.bf16.msra.mxu0 0
    %193 = vmatprep.subr.bf16.mxu0 0
    %194 = vmatpush1.bf16.msra.mxu0 0
    %195 = vmatprep.subr.bf16.mxu0 0
    %196 = vmatpush1.bf16.msra.mxu0 0
    %197 = vmatprep.subr.bf16.mxu0 0
    %198 = vmatpush1.bf16.msra.mxu0 0
    %199 = vmatprep.subr.bf16.mxu0 0
    %200 = vmatpush1.bf16.msra.mxu0 0
    %201 = vmatprep.subr.bf16.mxu0 0
    %202 = vmatpush1.bf16.msra.mxu0 0
    %203 = vmatprep.subr.bf16.mxu0 0
    %204 = vmatpush1.bf16.msra.mxu0 0
    %205 = vmatprep.subr.bf16.mxu0 0
    %206 = vmatpush1.bf16.msra.mxu0 0
    %207 = vmatprep.subr.bf16.mxu0 0
    %208 = vmatpush1.bf16.msra.mxu0 0
    %209 = vmatprep.subr.bf16.mxu0 0
    %210 = vmatpush1.bf16.msra.mxu0 0
    %211 = vmatprep.subr.bf16.mxu0 0
    %212 = vmatpush1.bf16.msra.mxu0 0
    %213 = vmatprep.subr.bf16.mxu0 0
    %214 = vmatpush1.bf16.msra.mxu0 0
    %215 = vmatprep.subr.bf16.mxu0 0
    %216 = vmatpush1.bf16.msra.mxu0 0
    %217 = vmatprep.subr.bf16.mxu0 0
    %218 = vmatpush1.bf16.msra.mxu0 0
    %219 = vmatprep.mubr.bf16.mxu0 0
    %220 = vmatmul.mubr.bf16.gmra.mrb[0].mxu0 %v181
    %v221 = vpop.f32.mrb[0].mxu0
    %v222 = vadd.f32 %v168, %v221
    %v223 = vpop.f32.mrb[0].mxu0
    %v224 = vpop.f32.mrb[0].mxu0
    %v225 = vadd.f32 %v168, %v224
    %v226 = vpop.f32.mrb[0].mxu0
    %227 = vdwg.mxu0
    %v228 = vmax.f32 %v222, 0.0
    %v229 = vmax.f32 %v225, 0.0
    %vm230 = vcmp.ne.f32.partialorder %v222, %v222
    %vm231 = vcmp.ne.f32.partialorder %v225, %v225
    %v232 = vadd.f32 %v222, 0.0
    %v233 = vadd.f32 %v225, 0.0
    %v234 = vand.u32 2147483647, %v222
    %v235 = vand.u32 2147483647, %v225
    %v236 = vsub.f32 0.0, %v234
    %v237 = vsub.f32 0.0, %v235
    %v238 = vmul.f32 %v236, 1.442695
    %v239 = vpow.pop %v238
    %v240 = vmul.f32 %v237, 1.442695
    %v241 = vpow.pop %v240
    %v242 = vadd.f32 %v239, 1.0
    %v243 = vlog2.pop %v242
    %v244 = vmul.f32 %v243, 0.6931472
    %v245 = vmul.f32 -0.5, %v239
    %v246 = vadd.f32 %v245, 1.0
    %v247 = vmul.f32 %v246, %v239
    %v248 = vand.u32 2147483647, %v239
    %vm249 = vcmp.lt.f32.partialorder %v248, 0.0004427343
    %v250 = vsel %vm249, %v247, %v244
    %v251 = vadd.f32 %v241, 1.0
    %v252 = vlog2.pop %v251
    %v253 = vmul.f32 %v252, 0.6931472
    %v254 = vmul.f32 -0.5, %v241
    %v255 = vadd.f32 %v254, 1.0
    %v256 = vmul.f32 %v255, %v241
    %v257 = vand.u32 2147483647, %v241
    %vm258 = vcmp.lt.f32.partialorder %v257, 0.0004427343
    %v259 = vsel %vm258, %v256, %v253
    %v260 = vadd.f32 %v228, %v250
    %v261 = vadd.f32 %v229, %v259
    %v262 = vsel %vm230, %v232, %v260
    %v263 = vsel %vm231, %v233, %v261
    %v264 = vadd.f32 %v262, 1.0
    %v265 = vadd.f32 %v263, 1.0
    %vm266 = vcmask 23552
    %v267 = vsel %vm266, %v264, 0.0
    %268 = vadd.xlane.f32.xlu0 %v267
    %v269 = vpop.xlane.xlu0 %268
    %v270 = vsel %vm266, %v265, 0.0
    %271 = vadd.xlane.f32.xlu0 %v270
    %v272 = vpop.xlane.xlu0 %271
    %v273 = vrcp.pop %v269
    %v274 = vmul.f32 1.0, %v273
    %v275 = vrcp.pop %v272
    %v276 = vmul.f32 1.0, %v275
    %v277 = vmul.f32 %v264, %v274
    %v278 = vmul.f32 %v265, %v276
    %v279 = vmul.f32 %v274, 3.0
    %v280 = vmul.f32 %v276, 3.0
    %283 = vrot.lane.b32.xlu0 %v262, 1
    %v284 = vpop.permute.xlu0 %283
    %285 = vrot.lane.b32.xlu0 %v263, 1
    %v286 = vpop.permute.xlu0 %285
    %291 = vrot.lane.b32.xlu0 %v264, 7
    %v292 = vpop.permute.xlu0 %291
    %293 = vrot.lane.b32.xlu0 %v265, 7
    %v294 = vpop.permute.xlu0 %293
    %v297 = vsel %vm266, %v277, %v279
    %v298 = vsel %vm266, %v278, %v280
    %vm299 = vcmask 31744
    %v300 = vsel %vm299, %v297, %v284
    %v301 = vsel %vm299, %v298, %v286
    %vm302 = vcmask 56320
    %v303 = vsel %vm302, %v300, %v292
    %v304 = vsel %vm302, %v301, %v294
    %vm305 = vcmask 80896
    %v306 = vsel %vm305, %v303, 0.0
    %v307 = vsel %vm305, %v304, 0.0
    %308 = vst [vmem:[#allocation11] sm:$0xff] %v306
    %309 = vst [vmem:[#allocation11 + $0x8] sm:$0xff] %v307
    // Predicated region
    $region42: #{tpu_custom_call.1} parent=1 // pred_check
      _
    $region43: #{tpu_custom_call.1} parent=1 // pred_check_branch
      %311 = sbr.rel (0) target = $region45
    $region44: #{tpu_custom_call.1} parent=1 // pred_region
      %s313 = ssub.s32 256, 256
      %314 = vsyncadd [#allocation4], %s313
      %s315 = sshll.u32 [#allocation11], 4
      %s316 = int_to_ptr.vmem [resolvable:$true] %s315
      %321 = dma.vmem_to_hbm [thread:$0]  %s316, 256, %s5, [#allocation4], 128, 128, 8
    $region45: #{tpu_custom_call.1} parent=1 // pred_fallthru
      _
    // Predicated region
    $region46: #{tpu_custom_call.1} parent=1 // pred_check
      _
    $region47: #{tpu_custom_call.1} parent=1 // pred_check_branch
      %323 = sbr.rel (0) target = $region49
    $region48: #{tpu_custom_call.1} parent=1 // pred_region
      %324 = dma.done [#allocation4], 256
    $region49: #{tpu_custom_call.1} parent=1 // pred_fallthru
      _
    %325 = vsyncpa [#allocation3], 1
    %326 = vsyncpa [#allocation6], 1
    %327 = vsyncpa [#allocation9], 1
    %328 = vsyncpa [#allocation4], 1

</llo_original>
